<compile_context>
chip_gen: v7x
topology: tpu7x:2x2x1
jax: 0.10.0
libtpu: 0.0.40
codegen_flags: <defaults>
</compile_context>

<pallas_src>
import jax
import jax.numpy as jnp
from jax.experimental import pallas as pl
from jax.experimental.pallas import tpu as pltpu

HP = 128      # lane-aligned per-gate width (>= hidden_size)
O_PAD = 128   # lane-dense padded output width (>= output_size)


def _sigmoid_via_tanh(z):
    # sigmoid(z) = 0.5 * (tanh(z/2) + 1): single EUP op; mul/add ride free VALU slots.
    return 0.5 * (jnp.tanh(0.5 * z) + 1.0)


def rnn_kernel(x_ref, wg_ref, bg_ref, wfc_ref, bfc_ref, out_ref):
    # x_ref:   (TM, I)       f32   (cast to bf16 here, per tile)
    # wg_ref:  (I, 3*HP)     bf16  (i|g|o gate weights, each gate padded to HP lanes)
    # bg_ref:  (1, 3*HP)     f32
    # wfc_ref: (HP, O_PAD)   bf16  (rows >= H and cols >= O are zero)
    # bfc_ref: (1, O_PAD)    f32   (cols >= O hold -1e4 so padded outputs are exactly 0)
    # out_ref: (TM, O_PAD)   bf16
    x = x_ref[...].astype(jnp.bfloat16)

    # One fused MXU push for the three live gates; f32 accumulation.
    gates = jnp.dot(x, wg_ref[...], preferred_element_type=jnp.float32) + bg_ref[...]

    # 128-lane-aligned slices: free vreg picks, no cross-lane shuffles.
    i_g = _sigmoid_via_tanh(gates[:, 0 * HP:1 * HP])
    g_g = jnp.tanh(gates[:, 1 * HP:2 * HP])
    o_g = _sigmoid_via_tanh(gates[:, 2 * HP:3 * HP])

    # c = i*g (forget-gate term vanishes since c0 == 0); h = o * tanh(c).
    # Padded lanes of h hit all-zero rows of wfc, so they contribute nothing.
    h = o_g * jnp.tanh(i_g * g_g)                             # (TM, HP) f32

    y = jnp.dot(h.astype(jnp.bfloat16), wfc_ref[...],
                preferred_element_type=jnp.float32) + bfc_ref[...]
    out_ref[...] = _sigmoid_via_tanh(y).astype(out_ref.dtype)


def make_params(key, input_size, hidden_size, output_size):
    """Deterministic init matching PyTorch's U(-1/sqrt(H), 1/sqrt(H)) scheme."""
    assert hidden_size <= HP and output_size <= O_PAD
    ks = jax.random.split(key, 6)
    k = 1.0 / jnp.sqrt(jnp.float32(hidden_size))
    H = hidden_size

    w_ih = jax.random.uniform(ks[0], (4 * H, input_size), jnp.float32, -k, k)
    b_ih = jax.random.uniform(ks[1], (4 * H,), jnp.float32, -k, k)
    b_hh = jax.random.uniform(ks[2], (4 * H,), jnp.float32, -k, k)
    # w_hh exists in nn.LSTM but multiplies h0 == 0, so it never affects the output.
    w_fc = jax.random.uniform(ks[3], (output_size, H), jnp.float32, -k, k)
    b_fc = jax.random.uniform(ks[4], (output_size,), jnp.float32, -k, k)

    b = b_ih + b_hh  # combined bias (the h0 term contributes nothing else)

    def gate(idx):
        # PyTorch gate order in w_ih / biases: i, f, g, o
        return w_ih[idx * H:(idx + 1) * H, :].T, b[idx * H:(idx + 1) * H]

    (wi, bi), (wg, bg), (wo, bo) = gate(0), gate(2), gate(3)  # skip dead forget gate

    # Lane-aligned fused gate weight/bias: each gate occupies its own 128-lane block.
    I = input_size
    w_gates = jnp.zeros((I, 3 * HP), jnp.float32)
    b_gates = jnp.zeros((1, 3 * HP), jnp.float32)
    for g_idx, (w, bb) in enumerate(((wi, bi), (wg, bg), (wo, bo))):
        w_gates = w_gates.at[:, g_idx * HP:g_idx * HP + H].set(w)
        b_gates = b_gates.at[0, g_idx * HP:g_idx * HP + H].set(bb)

    # fc head over the padded (HP-wide) hidden state; pad rows/cols are zero,
    # pad bias is -1e4 so the sigmoid of padded output lanes is exactly 0.
    w_fc_pad = jnp.zeros((HP, O_PAD), jnp.float32).at[:H, :output_size].set(w_fc.T)
    b_fc_pad = jnp.full((1, O_PAD), -1e4, jnp.float32).at[0, :output_size].set(b_fc)

    return dict(
        w_gates=w_gates.astype(jnp.bfloat16),
        b_gates=b_gates,                                  # f32 (added post-matmul)
        w_fc=w_fc_pad.astype(jnp.bfloat16),
        b_fc=b_fc_pad,                                    # f32
        hidden_size=H,
        output_size=output_size,
        # unpadded f32 copies for the pure-JAX reference
        _wi=wi, _wg=wg, _wo=wo, _bi=bi, _bg=bg, _bo=bo,
        _wfc=w_fc.T, _bfc=b_fc,
    )


def _round_up(n, m):
    return ((n + m - 1) // m) * m


def rnn_forward(x, p, tm=1024):
    N, I = x.shape
    O = p["output_size"]

    # Row tile: multiple of 16 (bf16 sublane packing), large default to amortize
    # the ~0.35us/grid-step overhead, capped at ceil(N/2) for large N so the
    # "parallel" axis gives both v7x TensorCores work.  Ragged tails are handled
    # by the pl.cdiv grid (no wrapper-side pad / cast passes over x).
    if N <= 32:
        TM = _round_up(N, 8)
    else:
        TM = min(tm, _round_up(pl.cdiv(N, 2), 16))
    grid = (pl.cdiv(N, TM),)

    out_full = pl.pallas_call(
        rnn_kernel,
        out_shape=jax.ShapeDtypeStruct((N, O_PAD), jnp.bfloat16),
        grid=grid,
        in_specs=[
            pl.BlockSpec((TM, I), lambda i: (i, 0)),          # f32 x tiles stream over N
            pl.BlockSpec((I, 3 * HP), lambda i: (0, 0)),      # fused gate weight, resident
            pl.BlockSpec((1, 3 * HP), lambda i: (0, 0)),      # fused gate bias, resident
            pl.BlockSpec((HP, O_PAD), lambda i: (0, 0)),      # fc weight (padded), resident
            pl.BlockSpec((1, O_PAD), lambda i: (0, 0)),       # fc bias (padded), resident
        ],
        out_specs=pl.BlockSpec((TM, O_PAD), lambda i: (i, 0)),
        compiler_params=pltpu.CompilerParams(
            dimension_semantics=("parallel",)),
    )(x, p["w_gates"], p["b_gates"], p["w_fc"], p["b_fc"])

    return out_full[:, :O].astype(jnp.float32)


def rnn_reference(x, p):
    """Plain-JAX f32 reference with the UNPADDED weights (validates padding too)."""
    i_g = jax.nn.sigmoid(x @ p["_wi"] + p["_bi"])
    g_g = jnp.tanh(x @ p["_wg"] + p["_bg"])
    o_g = jax.nn.sigmoid(x @ p["_wo"] + p["_bo"])
    h = o_g * jnp.tanh(i_g * g_g)
    return jax.nn.sigmoid(h @ p["_wfc"] + p["_bfc"])


if __name__ == "__main__":
    input_size, hidden_size, output_size = 32, 32, 4
    seq = 8  # original x is (seq, input_size)

    key = jax.random.PRNGKey(0)
    kx, kp = jax.random.split(key)
    x = jax.random.normal(kx, (seq, input_size), jnp.float32)
    params = make_params(kp, input_size, hidden_size, output_size)

    out = jax.block_until_ready(rnn_forward(x, params))
    ref = rnn_reference(x, params)

    assert out.shape == (seq, output_size)
    # bf16 matmul operands / bf16 output slab vs f32 reference.
    assert jnp.allclose(out, ref, atol=2e-2, rtol=2e-2)

    print("KERNEL_OK")
</pallas_src>

<mosaic_0001>
module attributes {stable_mosaic.version = 11 : i64} {
  func.func @rnn_kernel(%arg0: i32, %arg1: memref<8x32xf32, #tpu.memory_space<vmem>>, %arg2: memref<32x384xbf16, #tpu.memory_space<vmem>>, %arg3: memref<1x384xf32, #tpu.memory_space<vmem>>, %arg4: memref<128x128xbf16, #tpu.memory_space<vmem>>, %arg5: memref<1x128xf32, #tpu.memory_space<vmem>>, %arg6: memref<8x128xbf16, #tpu.memory_space<vmem>>) attributes {dimension_semantics = [#tpu.dimension_semantics<parallel>], iteration_bounds = array<i64: 1>, scalar_prefetch = 0 : i64, scratch_operands = 0 : i64, tpu.core_type = #tpu.core_type<tc>, window_params = [{transform_indices = @transform_0, window_bounds = array<i64: 8, 32>}, {pipeline_mode = #tpu.pipeline_mode<synchronous>, transform_indices = @transform_1, window_bounds = array<i64: 32, 384>}, {pipeline_mode = #tpu.pipeline_mode<synchronous>, transform_indices = @transform_2, window_bounds = array<i64: 1, 384>}, {pipeline_mode = #tpu.pipeline_mode<synchronous>, transform_indices = @transform_3, window_bounds = array<i64: 128, 128>}, {pipeline_mode = #tpu.pipeline_mode<synchronous>, transform_indices = @transform_4, window_bounds = array<i64: 1, 128>}, {transform_indices = @transform_5, window_bounds = array<i64: 8, 128>}]} {
    %c0 = arith.constant 0 : index
    %c0_0 = arith.constant 0 : index
    %0 = vector.load %arg1[%c0, %c0_0] : memref<8x32xf32, #tpu.memory_space<vmem>>, vector<8x32xf32>
    %1 = arith.truncf %0 : vector<8x32xf32> to vector<8x32xbf16>
    %c0_1 = arith.constant 0 : index
    %c0_2 = arith.constant 0 : index
    %2 = vector.load %arg2[%c0_1, %c0_2] : memref<32x384xbf16, #tpu.memory_space<vmem>>, vector<32x384xbf16>
    %cst = arith.constant dense<0.000000e+00> : vector<8x384xf32>
    %3 = tpu.matmul %1, %2, %cst {dimension_numbers = #tpu.dot_dimension_numbers<[1], [0], [0], [1], [0, 0, 1, 1], [], []>} : vector<8x32xbf16>, vector<32x384xbf16>, vector<8x384xf32> -> vector<8x384xf32>
    %c0_3 = arith.constant 0 : index
    %c0_4 = arith.constant 0 : index
    %4 = vector.load %arg3[%c0_3, %c0_4] : memref<1x384xf32, #tpu.memory_space<vmem>>, vector<1x384xf32>
    %5 = vector.broadcast %4 : vector<1x384xf32> to vector<8x384xf32>
    %6 = arith.addf %3, %5 : vector<8x384xf32>
    %7 = vector.extract_strided_slice %6 {offsets = [0, 0], sizes = [8, 128], strides = [1, 1]} : vector<8x384xf32> to vector<8x128xf32>
    %cst_5 = arith.constant 5.000000e-01 : f32
    %8 = vector.broadcast %cst_5 : f32 to vector<8x128xf32>
    %9 = arith.mulf %8, %7 : vector<8x128xf32>
    %10 = math.tanh %9 : vector<8x128xf32>
    %cst_6 = arith.constant 1.000000e+00 : f32
    %11 = vector.broadcast %cst_6 : f32 to vector<8x128xf32>
    %12 = arith.addf %10, %11 : vector<8x128xf32>
    %cst_7 = arith.constant 5.000000e-01 : f32
    %13 = vector.broadcast %cst_7 : f32 to vector<8x128xf32>
    %14 = arith.mulf %13, %12 : vector<8x128xf32>
    %15 = vector.extract_strided_slice %6 {offsets = [0, 128], sizes = [8, 128], strides = [1, 1]} : vector<8x384xf32> to vector<8x128xf32>
    %16 = math.tanh %15 : vector<8x128xf32>
    %17 = vector.extract_strided_slice %6 {offsets = [0, 256], sizes = [8, 128], strides = [1, 1]} : vector<8x384xf32> to vector<8x128xf32>
    %cst_8 = arith.constant 5.000000e-01 : f32
    %18 = vector.broadcast %cst_8 : f32 to vector<8x128xf32>
    %19 = arith.mulf %18, %17 : vector<8x128xf32>
    %20 = math.tanh %19 : vector<8x128xf32>
    %cst_9 = arith.constant 1.000000e+00 : f32
    %21 = vector.broadcast %cst_9 : f32 to vector<8x128xf32>
    %22 = arith.addf %20, %21 : vector<8x128xf32>
    %cst_10 = arith.constant 5.000000e-01 : f32
    %23 = vector.broadcast %cst_10 : f32 to vector<8x128xf32>
    %24 = arith.mulf %23, %22 : vector<8x128xf32>
    %25 = arith.mulf %14, %16 : vector<8x128xf32>
    %26 = math.tanh %25 : vector<8x128xf32>
    %27 = arith.mulf %24, %26 : vector<8x128xf32>
    %28 = arith.truncf %27 : vector<8x128xf32> to vector<8x128xbf16>
    %c0_11 = arith.constant 0 : index
    %c0_12 = arith.constant 0 : index
    %29 = vector.load %arg4[%c0_11, %c0_12] : memref<128x128xbf16, #tpu.memory_space<vmem>>, vector<128x128xbf16>
    %cst_13 = arith.constant dense<0.000000e+00> : vector<8x128xf32>
    %30 = tpu.matmul %28, %29, %cst_13 {dimension_numbers = #tpu.dot_dimension_numbers<[1], [0], [0], [1], [0, 0, 1, 1], [], []>} : vector<8x128xbf16>, vector<128x128xbf16>, vector<8x128xf32> -> vector<8x128xf32>
    %c0_14 = arith.constant 0 : index
    %c0_15 = arith.constant 0 : index
    %31 = vector.load %arg5[%c0_14, %c0_15] : memref<1x128xf32, #tpu.memory_space<vmem>>, vector<1x128xf32>
    %32 = vector.broadcast %31 : vector<1x128xf32> to vector<8x128xf32>
    %33 = arith.addf %30, %32 : vector<8x128xf32>
    %cst_16 = arith.constant 5.000000e-01 : f32
    %34 = vector.broadcast %cst_16 : f32 to vector<8x128xf32>
    %35 = arith.mulf %34, %33 : vector<8x128xf32>
    %36 = math.tanh %35 : vector<8x128xf32>
    %cst_17 = arith.constant 1.000000e+00 : f32
    %37 = vector.broadcast %cst_17 : f32 to vector<8x128xf32>
    %38 = arith.addf %36, %37 : vector<8x128xf32>
    %cst_18 = arith.constant 5.000000e-01 : f32
    %39 = vector.broadcast %cst_18 : f32 to vector<8x128xf32>
    %40 = arith.mulf %39, %38 : vector<8x128xf32>
    %41 = arith.truncf %40 : vector<8x128xf32> to vector<8x128xbf16>
    %c0_19 = arith.constant 0 : index
    %c0_20 = arith.constant 0 : index
    %42 = vector.load %arg6[%c0_19, %c0_20] : memref<8x128xbf16, #tpu.memory_space<vmem>>, vector<8x128xbf16>
    tpu.vector_store %arg6[%c0_19, %c0_20], %41 {strides = array<i32>} : memref<8x128xbf16, #tpu.memory_space<vmem>>, vector<8x128xbf16>,
    return
  }
  func.func @transform_0(%arg0: i32) -> (i32, i32) {
    %c0_i32 = arith.constant 0 : i32
    %c0_i32_0 = arith.constant 0 : i32
    return %arg0, %c0_i32 : i32, i32
  }
  func.func @transform_1(%arg0: i32) -> (i32, i32) {
    %c0_i32 = arith.constant 0 : i32
    %c0_i32_0 = arith.constant 0 : i32
    %c0_i32_1 = arith.constant 0 : i32
    return %c0_i32, %c0_i32_0 : i32, i32
  }
  func.func @transform_2(%arg0: i32) -> (i32, i32) {
    %c0_i32 = arith.constant 0 : i32
    %c0_i32_0 = arith.constant 0 : i32
    %c0_i32_1 = arith.constant 0 : i32
    return %c0_i32, %c0_i32_0 : i32, i32
  }
  func.func @transform_3(%arg0: i32) -> (i32, i32) {
    %c0_i32 = arith.constant 0 : i32
    %c0_i32_0 = arith.constant 0 : i32
    %c0_i32_1 = arith.constant 0 : i32
    return %c0_i32, %c0_i32_0 : i32, i32
  }
  func.func @transform_4(%arg0: i32) -> (i32, i32) {
    %c0_i32 = arith.constant 0 : i32
    %c0_i32_0 = arith.constant 0 : i32
    %c0_i32_1 = arith.constant 0 : i32
    return %c0_i32, %c0_i32_0 : i32, i32
  }
  func.func @transform_5(%arg0: i32) -> (i32, i32) {
    %c0_i32 = arith.constant 0 : i32
    %c0_i32_0 = arith.constant 0 : i32
    return %arg0, %c0_i32 : i32, i32
  }
}

</mosaic_0001>

<llo_original>
// kernel: tpu_custom_call.1
$region0: #{tpu_custom_call.1}
  #allocation0 [shape = 'u32[]', space=smem, size = 0x4, offset = 0x4, fixed_abs, tag = 'smem constant byte address 0x4 - core index']
  #allocation1 [shape = 'u32[144,128]{1,0:T(1,128)}', space=vmem, size = 0x12000, scoped, tag = 'internal scratch']
  %s0 = inlined_call_operand.hbm [shape: f32[8,32], index: 0, kind: input, shape index: {}]
  %s1 = inlined_call_operand.hbm [shape: bf16[32,384], index: 1, kind: input, shape index: {}]
  %s2 = inlined_call_operand.vmem [shape: f32[1,384], index: 2, kind: input, shape index: {}]
  %s3 = inlined_call_operand.hbm [shape: bf16[128,128], index: 3, kind: input, shape index: {}]
  %s4 = inlined_call_operand.vmem [shape: f32[1,128], index: 4, kind: input, shape index: {}]
  %s5 = inlined_call_operand.hbm [shape: bf16[8,128], index: 5, kind: output, shape index: {}]
  %s6 = sld [smem:[#allocation0]]
  $region42: #{tpu_custom_call.1} parent=0
    _
  %s8 = ssub.s32 1, %s6
  %s9 = scalar_select 0, %s8, %s6
  $region1: #{tpu_custom_call.1} parent=0
    #allocation2 [shape = 'u8[4096]{0}', space=vmem, size = 0x1000, scoped, tag = 'input window, operand 0, single buffered']
    #allocation3 [shape = 's32[1]{0}', space=sflag, size = 0x4, scoped, tag = 'scoped memory for tpu_custom_call.1']
    #allocation4 [shape = 's32[1]{0}', space=sflag, size = 0x4, scoped, tag = 'scoped memory for tpu_custom_call.1']
    #allocation5 [shape = 'u8[24576]{0}', space=vmem, size = 0x6000, scoped, tag = 'input window, operand 1, single buffered']
    #allocation6 [shape = 's32[1]{0}', space=sflag, size = 0x4, scoped, tag = 'scoped memory for tpu_custom_call.1']
    #allocation7 [shape = 'u8[32768]{0}', space=vmem, size = 0x8000, scoped, tag = 'input window, operand 3, single buffered']
    #allocation8 [shape = 'u8[2048]{0}', space=vmem, size = 0x800, scoped, tag = 'output window, operand 0, single buffered']
    %10 = vsyncpa [#allocation3], 0
    %11 = vsyncpa [#allocation6], 0
    %12 = vsyncpa [#allocation4], 0
    // Predicated region
    $region2: #{tpu_custom_call.1} parent=1 // pred_check
      _
    $region3: #{tpu_custom_call.1} parent=1 // pred_check_branch
      %14 = sbr.rel (0) target = $region5
    $region4: #{tpu_custom_call.1} parent=1 // pred_region
      %s16 = ssub.s32 128, 128
      %17 = vsyncadd [#allocation3], %s16
      %s19 = sshll.u32 [#allocation2], 4
      %s20 = int_to_ptr.vmem [resolvable:$true] %s19
      %22 = dma.hbm_to_vmem [thread:$0]  %s0, 128, %s20, [#allocation3]
    $region5: #{tpu_custom_call.1} parent=1 // pred_fallthru
      _
    // Predicated region
    $region6: #{tpu_custom_call.1} parent=1 // pred_check
      _
    $region7: #{tpu_custom_call.1} parent=1 // pred_check_branch
      %24 = sbr.rel (0) target = $region9
    $region8: #{tpu_custom_call.1} parent=1 // pred_region
      %s26 = ssub.s32 768, 768
      %27 = vsyncadd [#allocation6], %s26
      %s28 = sshll.u32 [#allocation5], 4
      %s29 = int_to_ptr.vmem [resolvable:$true] %s28
      %34 = dma.hbm_to_vmem [thread:$0]  %s1, 768, %s29, [#allocation6], 192, 192, 12
    $region9: #{tpu_custom_call.1} parent=1 // pred_fallthru
      _
    // Predicated region
    $region10: #{tpu_custom_call.1} parent=1 // pred_check
      _
    $region11: #{tpu_custom_call.1} parent=1 // pred_check_branch
      %36 = sbr.rel (0) target = $region13
    $region12: #{tpu_custom_call.1} parent=1 // pred_region
      _
    $region13: #{tpu_custom_call.1} parent=1 // pred_fallthru
      _
    // Predicated region
    $region14: #{tpu_custom_call.1} parent=1 // pred_check
      _
    $region15: #{tpu_custom_call.1} parent=1 // pred_check_branch
      %38 = sbr.rel (0) target = $region17
    $region16: #{tpu_custom_call.1} parent=1 // pred_region
      %s40 = ssub.s32 1024, 1024
      %41 = vsyncadd [#allocation6], %s40
      %s42 = sshll.u32 [#allocation7], 4
      %s43 = int_to_ptr.vmem [resolvable:$true] %s42
      %48 = dma.hbm_to_vmem [thread:$0]  %s3, 1024, %s43, [#allocation6], 64, 64, 4
    $region17: #{tpu_custom_call.1} parent=1 // pred_fallthru
      _
    // Predicated region
    $region18: #{tpu_custom_call.1} parent=1 // pred_check
      _
    $region19: #{tpu_custom_call.1} parent=1 // pred_check_branch
      %50 = sbr.rel (0) target = $region21
    $region20: #{tpu_custom_call.1} parent=1 // pred_region
      _
    $region21: #{tpu_custom_call.1} parent=1 // pred_fallthru
      _
    // Predicated region
    $region22: #{tpu_custom_call.1} parent=1 // pred_check
      _
    $region23: #{tpu_custom_call.1} parent=1 // pred_check_branch
      %52 = sbr.rel (0) target = $region25
    $region24: #{tpu_custom_call.1} parent=1 // pred_region
      %53 = dma.done [#allocation3], 128
    $region25: #{tpu_custom_call.1} parent=1 // pred_fallthru
      _
    // Predicated region
    $region26: #{tpu_custom_call.1} parent=1 // pred_check
      _
    $region27: #{tpu_custom_call.1} parent=1 // pred_check_branch
      %55 = sbr.rel (0) target = $region29
    $region28: #{tpu_custom_call.1} parent=1 // pred_region
      %56 = dma.done [#allocation6], 768
    $region29: #{tpu_custom_call.1} parent=1 // pred_fallthru
      _
    // Predicated region
    $region30: #{tpu_custom_call.1} parent=1 // pred_check
      _
    $region31: #{tpu_custom_call.1} parent=1 // pred_check_branch
      %58 = sbr.rel (0) target = $region33
    $region32: #{tpu_custom_call.1} parent=1 // pred_region
      %59 = dma.done [#allocation6], 1024
    $region33: #{tpu_custom_call.1} parent=1 // pred_fallthru
      _
    %v61 = vld [vmem:[#allocation2] sm:$0xff]
    %v62 = vpack.c.bf16 %v61, %v61
    %v63 = vld [vmem:[#allocation5] sm:$0xff]
    %v64 = vld [vmem:[#allocation5 + $0x8] sm:$0xf]
    %v65 = vld [vmem:[#allocation5 + $0xc] sm:$0xff]
    %v66 = vld [vmem:[#allocation5 + $0x14] sm:$0xf]
    %v67 = vld [vmem:[#allocation5 + $0x18] sm:$0xff]
    %v68 = vld [vmem:[#allocation5 + $0x20] sm:$0xf]
    %v69 = vld [vmem:[#allocation5 + $0x24] sm:$0xff]
    %v70 = vld [vmem:[#allocation5 + $0x2c] sm:$0xf]
    %v71 = vld [vmem:[%s2] sm:$0x7]
    %v73 = vlaneseq
    %v74 = vshrl.u32 %v73, 7
    %v75 = vsub.s32 0, %v74
    %v76 = vrot.slane %v71, %v75
    %v77 = vlaneseq
    %v78 = vshrl.u32 %v77, 7
    %v79 = vsub.s32 1, %v78
    %v80 = vrot.slane %v71, %v79
    %v81 = vlaneseq
    %v82 = vshrl.u32 %v81, 7
    %v83 = vsub.s32 2, %v82
    %v84 = vrot.slane %v71, %v83
    %v96 = vunpack.c.l.b16 %v63
    %v97 = vunpack.c.h.b16 %v63
    %v98 = vunpack.c.l.b16 %v64
    %v99 = vunpack.c.l.b16 %v65
    %v100 = vunpack.c.h.b16 %v65
    %v101 = vunpack.c.l.b16 %v66
    %v102 = vunpack.c.l.b16 %v67
    %v103 = vunpack.c.h.b16 %v67
    %v104 = vunpack.c.l.b16 %v68
    %v105 = vunpack.c.l.b16 %v69
    %v106 = vunpack.c.h.b16 %v69
    %v107 = vunpack.c.l.b16 %v70
    %v108 = vpack.c.b16 %v99, %v96
    %v109 = vpack.c.b16 %v100, %v97
    %v110 = vpack.c.b16 %v101, %v98
    %v111 = vpack.c.b16 %v105, %v102
    %v112 = vpack.c.b16 %v106, %v103
    %v113 = vpack.c.b16 %v107, %v104
    %vm120 = vcmask 261120
    %v122 = vsel %vm120, %v62, 0
    %124 = vmatprep.subr.bf16.mxu0 %v109
    %125 = vmatpush1.bf16.msra.mxu0 %v108
    %126 = vmatprep.subr.bf16.mxu0 %v112
    %127 = vmatpush1.bf16.msra.mxu0 %v111
    %128 = vmatprep.subr.bf16.mxu0 0
    %129 = vmatpush1.bf16.msra.mxu0 0
    %130 = vmatprep.subr.bf16.mxu0 0
    %131 = vmatpush1.bf16.msra.mxu0 0
    %132 = vmatprep.subr.bf16.mxu0 0
    %133 = vmatpush1.bf16.msra.mxu0 0
    %134 = vmatprep.subr.bf16.mxu0 0
    %135 = vmatpush1.bf16.msra.mxu0 0
    %136 = vmatprep.subr.bf16.mxu0 0
    %137 = vmatpush1.bf16.msra.mxu0 0
    %138 = vmatprep.subr.bf16.mxu0 0
    %139 = vmatpush1.bf16.msra.mxu0 0
    %140 = vmatprep.subr.bf16.mxu0 0
    %141 = vmatpush1.bf16.msra.mxu0 0
    %142 = vmatprep.subr.bf16.mxu0 0
    %143 = vmatpush1.bf16.msra.mxu0 0
    %144 = vmatprep.subr.bf16.mxu0 0
    %145 = vmatpush1.bf16.msra.mxu0 0
    %146 = vmatprep.subr.bf16.mxu0 0
    %147 = vmatpush1.bf16.msra.mxu0 0
    %148 = vmatprep.subr.bf16.mxu0 0
    %149 = vmatpush1.bf16.msra.mxu0 0
    %150 = vmatprep.subr.bf16.mxu0 0
    %151 = vmatpush1.bf16.msra.mxu0 0
    %152 = vmatprep.subr.bf16.mxu0 0
    %153 = vmatpush1.bf16.msra.mxu0 0
    %154 = vmatprep.subr.bf16.mxu0 0
    %155 = vmatpush1.bf16.msra.mxu0 0
    %156 = vmatprep.mubr.bf16.mxu0 0
    %157 = vmatmul.mubr.bf16.gmra.mrb[0].mxu0 %v122
    %v158 = vpop.f32.mrb[0].mxu0
    %v159 = vadd.f32 %v76, %v158
    %v160 = vpop.f32.mrb[0].mxu0
    %v161 = vadd.f32 %v80, %v160
    %v162 = vpop.f32.mrb[0].mxu0
    %v163 = vpop.f32.mrb[0].mxu0
    %164 = vdwg.mxu0
    %165 = vmatprep.subr.bf16.mxu0 0
    %166 = vmatpush1.bf16.msra.mxu0 %v110
    %167 = vmatprep.subr.bf16.mxu0 0
    %168 = vmatpush1.bf16.msra.mxu0 %v113
    %169 = vmatprep.subr.bf16.mxu0 0
    %170 = vmatpush1.bf16.msra.mxu0 0
    %171 = vmatprep.subr.bf16.mxu0 0
    %172 = vmatpush1.bf16.msra.mxu0 0
    %173 = vmatprep.subr.bf16.mxu0 0
    %174 = vmatpush1.bf16.msra.mxu0 0
    %175 = vmatprep.subr.bf16.mxu0 0
    %176 = vmatpush1.bf16.msra.mxu0 0
    %177 = vmatprep.subr.bf16.mxu0 0
    %178 = vmatpush1.bf16.msra.mxu0 0
    %179 = vmatprep.subr.bf16.mxu0 0
    %180 = vmatpush1.bf16.msra.mxu0 0
    %181 = vmatprep.subr.bf16.mxu0 0
    %182 = vmatpush1.bf16.msra.mxu0 0
    %183 = vmatprep.subr.bf16.mxu0 0
    %184 = vmatpush1.bf16.msra.mxu0 0
    %185 = vmatprep.subr.bf16.mxu0 0
    %186 = vmatpush1.bf16.msra.mxu0 0
    %187 = vmatprep.subr.bf16.mxu0 0
    %188 = vmatpush1.bf16.msra.mxu0 0
    %189 = vmatprep.subr.bf16.mxu0 0
    %190 = vmatpush1.bf16.msra.mxu0 0
    %191 = vmatprep.subr.bf16.mxu0 0
    %192 = vmatpush1.bf16.msra.mxu0 0
    %193 = vmatprep.subr.bf16.mxu0 0
    %194 = vmatpush1.bf16.msra.mxu0 0
    %195 = vmatprep.subr.bf16.mxu0 0
    %196 = vmatpush1.bf16.msra.mxu0 0
    %197 = vmatprep.mubr.bf16.mxu0 0
    %198 = vmatmul.mubr.bf16.gmra.mrb[0].mxu0 %v122
    %v199 = vpop.f32.mrb[0].mxu0
    %v200 = vadd.f32 %v84, %v199
    %v201 = vpop.f32.mrb[0].mxu0
    %v202 = vpop.f32.mrb[0].mxu0
    %v203 = vpop.f32.mrb[0].mxu0
    %204 = vdwg.mxu0
    %v205 = vmul.f32 %v159, 0.5
    %v206 = vtanh.pop %v205
    %v207 = vadd.f32 %v206, 1.0
    %v208 = vmul.f32 %v207, 0.5
    %v209 = vtanh.pop %v161
    %v210 = vmul.f32 %v200, 0.5
    %v211 = vtanh.pop %v210
    %v212 = vadd.f32 %v211, 1.0
    %v213 = vmul.f32 %v212, 0.5
    %v214 = vmul.f32 %v208, %v209
    %v215 = vtanh.pop %v214
    %v216 = vmul.f32 %v213, %v215
    %v217 = vpack.c.bf16 %v216, %v216
    %v218 = vld [vmem:[#allocation7] sm:$0xf]
    %v219 = vld [vmem:[#allocation7 + $0x4] sm:$0xf]
    %v220 = vld [vmem:[#allocation7 + $0x8] sm:$0xf]
    %v221 = vld [vmem:[#allocation7 + $0xc] sm:$0xf]
    %v222 = vld [vmem:[#allocation7 + $0x10] sm:$0xf]
    %v223 = vld [vmem:[#allocation7 + $0x14] sm:$0xf]
    %v224 = vld [vmem:[#allocation7 + $0x18] sm:$0xf]
    %v225 = vld [vmem:[#allocation7 + $0x1c] sm:$0xf]
    %v226 = vld [vmem:[#allocation7 + $0x20] sm:$0xf]
    %v227 = vld [vmem:[#allocation7 + $0x24] sm:$0xf]
    %v228 = vld [vmem:[#allocation7 + $0x28] sm:$0xf]
    %v229 = vld [vmem:[#allocation7 + $0x2c] sm:$0xf]
    %v230 = vld [vmem:[#allocation7 + $0x30] sm:$0xf]
    %v231 = vld [vmem:[#allocation7 + $0x34] sm:$0xf]
    %v232 = vld [vmem:[#allocation7 + $0x38] sm:$0xf]
    %v233 = vld [vmem:[#allocation7 + $0x3c] sm:$0xf]
    %v234 = vld [vmem:[%s4] sm:$0x1]
    %v236 = vlaneseq
    %v237 = vshrl.u32 %v236, 7
    %v238 = vsub.s32 0, %v237
    %v239 = vrot.slane %v234, %v238
    %v257 = vunpack.c.l.b16 %v218
    %v258 = vunpack.c.l.b16 %v219
    %v259 = vunpack.c.l.b16 %v220
    %v260 = vunpack.c.l.b16 %v221
    %v261 = vunpack.c.l.b16 %v222
    %v262 = vunpack.c.l.b16 %v223
    %v263 = vunpack.c.l.b16 %v224
    %v264 = vunpack.c.l.b16 %v225
    %v265 = vunpack.c.l.b16 %v226
    %v266 = vunpack.c.l.b16 %v227
    %v267 = vunpack.c.l.b16 %v228
    %v268 = vunpack.c.l.b16 %v229
    %v269 = vunpack.c.l.b16 %v230
    %v270 = vunpack.c.l.b16 %v231
    %v271 = vunpack.c.l.b16 %v232
    %v272 = vunpack.c.l.b16 %v233
    %v273 = vpack.c.b16 %v258, %v257
    %v274 = vpack.c.b16 %v260, %v259
    %v275 = vpack.c.b16 %v262, %v261
    %v276 = vpack.c.b16 %v264, %v263
    %v277 = vpack.c.b16 %v266, %v265
    %v278 = vpack.c.b16 %v268, %v267
    %v279 = vpack.c.b16 %v270, %v269
    %v280 = vpack.c.b16 %v272, %v271
    %289 = vmatprep.subr.bf16.mxu0 0
    %290 = vmatpush1.bf16.msra.mxu0 %v273
    %291 = vmatprep.subr.bf16.mxu0 0
    %292 = vmatpush1.bf16.msra.mxu0 %v274
    %293 = vmatprep.subr.bf16.mxu0 0
    %294 = vmatpush1.bf16.msra.mxu0 %v275
    %295 = vmatprep.subr.bf16.mxu0 0
    %296 = vmatpush1.bf16.msra.mxu0 %v276
    %297 = vmatprep.subr.bf16.mxu0 0
    %298 = vmatpush1.bf16.msra.mxu0 %v277
    %299 = vmatprep.subr.bf16.mxu0 0
    %300 = vmatpush1.bf16.msra.mxu0 %v278
    %301 = vmatprep.subr.bf16.mxu0 0
    %302 = vmatpush1.bf16.msra.mxu0 %v279
    %303 = vmatprep.subr.bf16.mxu0 0
    %304 = vmatpush1.bf16.msra.mxu0 %v280
    %305 = vmatprep.subr.bf16.mxu0 0
    %306 = vmatpush1.bf16.msra.mxu0 0
    %307 = vmatprep.subr.bf16.mxu0 0
    %308 = vmatpush1.bf16.msra.mxu0 0
    %309 = vmatprep.subr.bf16.mxu0 0
    %310 = vmatpush1.bf16.msra.mxu0 0
    %311 = vmatprep.subr.bf16.mxu0 0
    %312 = vmatpush1.bf16.msra.mxu0 0
    %313 = vmatprep.subr.bf16.mxu0 0
    %314 = vmatpush1.bf16.msra.mxu0 0
    %315 = vmatprep.subr.bf16.mxu0 0
    %316 = vmatpush1.bf16.msra.mxu0 0
    %317 = vmatprep.subr.bf16.mxu0 0
    %318 = vmatpush1.bf16.msra.mxu0 0
    %319 = vmatprep.subr.bf16.mxu0 0
    %320 = vmatpush1.bf16.msra.mxu0 0
    %321 = vmatprep.mubr.bf16.mxu0 0
    %322 = vmatmul.mubr.bf16.gmra.mrb[0].mxu0 %v217
    %v323 = vpop.f32.mrb[0].mxu0
    %v324 = vadd.f32 %v239, %v323
    %v325 = vpop.f32.mrb[0].mxu0
    %v326 = vpop.f32.mrb[0].mxu0
    %v327 = vpop.f32.mrb[0].mxu0
    %328 = vdwg.mxu0
    %v329 = vmul.f32 %v324, 0.5
    %v330 = vtanh.pop %v329
    %v331 = vadd.f32 %v330, 1.0
    %v332 = vmul.f32 %v331, 0.5
    %v333 = vpack.c.bf16 %v332, %v332
    %334 = vst [vmem:[#allocation8] sm:$0xf] %v333
    // Predicated region
    $region34: #{tpu_custom_call.1} parent=1 // pred_check
      _
    $region35: #{tpu_custom_call.1} parent=1 // pred_check_branch
      %336 = sbr.rel (0) target = $region37
    $region36: #{tpu_custom_call.1} parent=1 // pred_region
      %s338 = ssub.s32 64, 64
      %339 = vsyncadd [#allocation4], %s338
      %s341 = sshll.u32 [#allocation8], 4
      %s342 = int_to_ptr.vmem [resolvable:$true] %s341
      %344 = dma.vmem_to_hbm [thread:$0]  %s342, 64, %s5, [#allocation4]
    $region37: #{tpu_custom_call.1} parent=1 // pred_fallthru
      _
    // Predicated region
    $region38: #{tpu_custom_call.1} parent=1 // pred_check
      _
    $region39: #{tpu_custom_call.1} parent=1 // pred_check_branch
      %346 = sbr.rel (0) target = $region41
    $region40: #{tpu_custom_call.1} parent=1 // pred_region
      %347 = dma.done [#allocation4], 64
    $region41: #{tpu_custom_call.1} parent=1 // pred_fallthru
      _
    %348 = vsyncpa [#allocation3], 1
    %349 = vsyncpa [#allocation6], 1
    %350 = vsyncpa [#allocation4], 1

</llo_original>
